<compile_context>
chip_gen: v7x
topology: tpu7x:2x2x1
jax: 0.10.0
libtpu: 0.0.40
codegen_flags: <defaults>
</compile_context>

<pallas_src>
from functools import partial

import jax
import jax.numpy as jnp
from jax.experimental import pallas as pl
from jax.experimental.pallas import tpu as pltpu


IN_DIM = 353
H1 = 100
H2 = 50

_LANE = 128
_NEG = -1e30  # additive mask for padded logit columns (folded into b3)


def _round_up(n, m):
    return (n + m - 1) // m * m


# --------------------------------------------------------------------------
# Kernel: 3 matmuls + ReLU + numerically-stable log_softmax on one batch tile.
# --------------------------------------------------------------------------
def fcnet_kernel(x_ref, w1_ref, b1_ref, w2_ref, b2_ref, w3_ref, b3_ref, o_ref):
    # x arrives as f32 straight from HBM; cast to bf16 in VMEM (free vs. a
    # separate wrapper-side cast+materialize pass).
    x = x_ref[...].astype(jnp.bfloat16)                                  # [TB, K]

    h1 = jnp.dot(x, w1_ref[...], preferred_element_type=jnp.float32)    # [TB, 128]
    h1 = jnp.maximum(h1 + b1_ref[...], 0.0).astype(jnp.bfloat16)

    h2 = jnp.dot(h1, w2_ref[...], preferred_element_type=jnp.float32)   # [TB, 128]
    h2 = jnp.maximum(h2 + b2_ref[...], 0.0).astype(jnp.bfloat16)

    logits = jnp.dot(h2, w3_ref[...], preferred_element_type=jnp.float32)
    logits = logits + b3_ref[...]        # padded columns become ~-1e30 via b3

    # log_softmax along axis=1 (padded cols: exp(-1e30 - m) == 0)
    m = jnp.max(logits, axis=1, keepdims=True)
    shifted = logits - m
    lse = jnp.log(jnp.sum(jnp.exp(shifted), axis=1, keepdims=True))
    o_ref[...] = shifted - lse


# --------------------------------------------------------------------------
# Param prep: fuse gather into W1 (K = H*W, no K padding), zero-pad the
# narrow dims to 128 lanes, cast weights to bf16 (biases stay f32).
# --------------------------------------------------------------------------
def prepare_params(params, non_zero_index, hw_shape, output_dim):
    w1, b1, w2, b2, w3, b3 = params
    H, W = hw_shape
    K = H * W                                 # kernel block uses the full last dim
    h1_pad = _round_up(H1, _LANE)
    h2_pad = _round_up(H2, _LANE)
    out_pad = _round_up(output_dim, _LANE)

    flat_idx = (non_zero_index[0].astype(jnp.int32) * W
                + non_zero_index[1].astype(jnp.int32))                   # [353]

    # Fused W1: rows at flat_idx hold the original 353 input weights
    # (scatter-ADD so duplicate index pairs match the gather semantics);
    # all other spatial positions are zero.
    w1_rows = jnp.zeros((IN_DIM, h1_pad), jnp.float32).at[:, :H1].set(w1)
    w1f = jnp.zeros((K, h1_pad), jnp.float32).at[flat_idx].add(w1_rows)

    w2p = jnp.zeros((h1_pad, h2_pad), jnp.float32).at[:H1, :H2].set(w2)
    w3p = jnp.zeros((h2_pad, out_pad), jnp.float32).at[:H2, :output_dim].set(w3)

    b1p = jnp.zeros((1, h1_pad), jnp.float32).at[:, :H1].set(b1)
    b2p = jnp.zeros((1, h2_pad), jnp.float32).at[:, :H2].set(b2)
    # Mask padded logit columns through the bias: exp(-1e30 - m) == 0.
    b3p = jnp.full((1, out_pad), _NEG, jnp.float32).at[:, :output_dim].set(b3)

    return (w1f.astype(jnp.bfloat16), b1p,
            w2p.astype(jnp.bfloat16), b2p,
            w3p.astype(jnp.bfloat16), b3p)


# --------------------------------------------------------------------------
# Forward wrapper.
# --------------------------------------------------------------------------
@partial(jax.jit, static_argnames=("output_dim", "tile_b"))
def fcnet_forward(x, fused_params, *, output_dim, tile_b=1024):
    """x: [B, H, W] f32; fused_params: output of prepare_params."""
    w1f, b1p, w2p, b2p, w3p, b3p = fused_params
    B, H, W = x.shape
    K = w1f.shape[0]
    out_pad = w3p.shape[1]
    assert H * W == K, "fused params were built for a different (H, W)"

    # Free reshape (contiguous) -- no cast, no pad, no extra HBM pass.
    xf = x.reshape(B, K)

    if B <= 16:
        # Single tile with block dim == full array dim (always a legal block).
        tb = B
    else:
        # >=2 grid steps so both v7x TensorCores get work; multiple of 16 rows
        # for clean bf16 sublane packing of the activations.
        tb = min(tile_b, _round_up(pl.cdiv(B, 2), 16))
    grid = (pl.cdiv(B, tb),)   # ragged last block handled (masked) by Pallas

    out = pl.pallas_call(
        fcnet_kernel,
        out_shape=jax.ShapeDtypeStruct((B, out_pad), jnp.float32),
        grid=grid,
        in_specs=[
            pl.BlockSpec((tb, K), lambda i: (i, 0)),        # x tile (pipelined)
            # Constant index maps -> weights/biases fetched once, stay resident.
            pl.BlockSpec(w1f.shape, lambda i: (0, 0)),
            pl.BlockSpec(b1p.shape, lambda i: (0, 0)),
            pl.BlockSpec(w2p.shape, lambda i: (0, 0)),
            pl.BlockSpec(b2p.shape, lambda i: (0, 0)),
            pl.BlockSpec(w3p.shape, lambda i: (0, 0)),
            pl.BlockSpec(b3p.shape, lambda i: (0, 0)),
        ],
        out_specs=pl.BlockSpec((tb, out_pad), lambda i: (i, 0)),
        compiler_params=pltpu.CompilerParams(
            dimension_semantics=("parallel",)),             # 2 TCs on v7x
    )(xf, w1f, b1p, w2p, b2p, w3p, b3p)

    # Padded columns (output_dim..127) contain ~-1e30 garbage; slice them off.
    # Under jit this slice fuses with the consumer (loss / argmax).
    return out[:, :output_dim]


# --------------------------------------------------------------------------
# Deterministic init (weights stored [in, out] = transpose of PyTorch).
# --------------------------------------------------------------------------
def init_params(key, output_dim):
    ks = jax.random.split(key, 6)

    def lin(kw, kb, fan_in, fan_out):
        bound = 1.0 / jnp.sqrt(fan_in)
        w = jax.random.uniform(kw, (fan_in, fan_out), jnp.float32, -bound, bound)
        b = jax.random.uniform(kb, (1, fan_out), jnp.float32, -bound, bound)
        return w, b

    w1, b1 = lin(ks[0], ks[1], IN_DIM, H1)
    w2, b2 = lin(ks[2], ks[3], H1, H2)
    w3, b3 = lin(ks[4], ks[5], H2, output_dim)
    return (w1, b1, w2, b2, w3, b3)


# --------------------------------------------------------------------------
# Pure-JAX reference replicating the same bf16 rounding (for a tight check).
# --------------------------------------------------------------------------
def _reference(x, non_zero_index, params):
    w1, b1, w2, b2, w3, b3 = params
    bf = lambda a: a.astype(jnp.bfloat16).astype(jnp.float32)
    xg = bf(x[:, non_zero_index[0], non_zero_index[1]])
    h1 = bf(jnp.maximum(xg @ bf(w1) + b1, 0.0))
    h2 = bf(jnp.maximum(h1 @ bf(w2) + b2, 0.0))
    logits = h2 @ bf(w3) + b3
    return jax.nn.log_softmax(logits, axis=1)


if __name__ == "__main__":
    key = jax.random.PRNGKey(0)
    k_x, k_idx, k_p = jax.random.split(key, 3)

    B, H, W = 2, 20, 20          # H*W = 400 spatial positions
    output_dim = 10

    x = jax.random.normal(k_x, (B, H, W), dtype=jnp.float32)

    # Deterministic choice of 353 (row, col) index pairs (like nonzero coords).
    flat_idx = jax.random.permutation(k_idx, H * W)[:IN_DIM]
    non_zero_index = jnp.stack([flat_idx // W, flat_idx % W]).astype(jnp.int32)

    params = init_params(k_p, output_dim)
    fused = prepare_params(params, non_zero_index, (H, W), output_dim)

    out = fcnet_forward(x, fused, output_dim=output_dim)
    out = jax.block_until_ready(out)

    assert out.shape == (B, output_dim)
    # log_softmax rows must (exp-)sum to ~1
    row_sums = jnp.sum(jnp.exp(out), axis=1)
    assert jnp.allclose(row_sums, 1.0, atol=1e-4)
    # match the (bf16-rounded) reference forward pass
    ref = _reference(x, non_zero_index, params)
    assert jnp.allclose(out, ref, atol=5e-2), float(jnp.max(jnp.abs(out - ref)))

    print("KERNEL_OK")
</pallas_src>

<mosaic_0001>
module attributes {stable_mosaic.version = 11 : i64} {
  func.func @fcnet_kernel(%arg0: i32, %arg1: memref<2x400xf32, #tpu.memory_space<vmem>>, %arg2: memref<400x128xbf16, #tpu.memory_space<vmem>>, %arg3: memref<1x128xf32, #tpu.memory_space<vmem>>, %arg4: memref<128x128xbf16, #tpu.memory_space<vmem>>, %arg5: memref<1x128xf32, #tpu.memory_space<vmem>>, %arg6: memref<128x128xbf16, #tpu.memory_space<vmem>>, %arg7: memref<1x128xf32, #tpu.memory_space<vmem>>, %arg8: memref<2x128xf32, #tpu.memory_space<vmem>>) attributes {dimension_semantics = [#tpu.dimension_semantics<parallel>], iteration_bounds = array<i64: 1>, scalar_prefetch = 0 : i64, scratch_operands = 0 : i64, tpu.core_type = #tpu.core_type<tc>, window_params = [{transform_indices = @transform_0, window_bounds = array<i64: 2, 400>}, {pipeline_mode = #tpu.pipeline_mode<synchronous>, transform_indices = @transform_1, window_bounds = array<i64: 400, 128>}, {pipeline_mode = #tpu.pipeline_mode<synchronous>, transform_indices = @transform_2, window_bounds = array<i64: 1, 128>}, {pipeline_mode = #tpu.pipeline_mode<synchronous>, transform_indices = @transform_3, window_bounds = array<i64: 128, 128>}, {pipeline_mode = #tpu.pipeline_mode<synchronous>, transform_indices = @transform_4, window_bounds = array<i64: 1, 128>}, {pipeline_mode = #tpu.pipeline_mode<synchronous>, transform_indices = @transform_5, window_bounds = array<i64: 128, 128>}, {pipeline_mode = #tpu.pipeline_mode<synchronous>, transform_indices = @transform_6, window_bounds = array<i64: 1, 128>}, {transform_indices = @transform_7, window_bounds = array<i64: 2, 128>}]} {
    %c0 = arith.constant 0 : index
    %c0_0 = arith.constant 0 : index
    %0 = vector.load %arg1[%c0, %c0_0] : memref<2x400xf32, #tpu.memory_space<vmem>>, vector<2x400xf32>
    %1 = arith.truncf %0 : vector<2x400xf32> to vector<2x400xbf16>
    %c0_1 = arith.constant 0 : index
    %c0_2 = arith.constant 0 : index
    %2 = vector.load %arg2[%c0_1, %c0_2] : memref<400x128xbf16, #tpu.memory_space<vmem>>, vector<400x128xbf16>
    %cst = arith.constant dense<0.000000e+00> : vector<2x128xf32>
    %3 = tpu.matmul %1, %2, %cst {dimension_numbers = #tpu.dot_dimension_numbers<[1], [0], [0], [1], [0, 0, 1, 1], [], []>} : vector<2x400xbf16>, vector<400x128xbf16>, vector<2x128xf32> -> vector<2x128xf32>
    %c0_3 = arith.constant 0 : index
    %c0_4 = arith.constant 0 : index
    %4 = vector.load %arg3[%c0_3, %c0_4] : memref<1x128xf32, #tpu.memory_space<vmem>>, vector<1x128xf32>
    %5 = vector.broadcast %4 : vector<1x128xf32> to vector<2x128xf32>
    %6 = arith.addf %3, %5 : vector<2x128xf32>
    %cst_5 = arith.constant 0.000000e+00 : f32
    %7 = vector.broadcast %cst_5 : f32 to vector<2x128xf32>
    %8 = arith.maximumf %6, %7 : vector<2x128xf32>
    %9 = arith.truncf %8 : vector<2x128xf32> to vector<2x128xbf16>
    %c0_6 = arith.constant 0 : index
    %c0_7 = arith.constant 0 : index
    %10 = vector.load %arg4[%c0_6, %c0_7] : memref<128x128xbf16, #tpu.memory_space<vmem>>, vector<128x128xbf16>
    %cst_8 = arith.constant dense<0.000000e+00> : vector<2x128xf32>
    %11 = tpu.matmul %9, %10, %cst_8 {dimension_numbers = #tpu.dot_dimension_numbers<[1], [0], [0], [1], [0, 0, 1, 1], [], []>} : vector<2x128xbf16>, vector<128x128xbf16>, vector<2x128xf32> -> vector<2x128xf32>
    %c0_9 = arith.constant 0 : index
    %c0_10 = arith.constant 0 : index
    %12 = vector.load %arg5[%c0_9, %c0_10] : memref<1x128xf32, #tpu.memory_space<vmem>>, vector<1x128xf32>
    %13 = vector.broadcast %12 : vector<1x128xf32> to vector<2x128xf32>
    %14 = arith.addf %11, %13 : vector<2x128xf32>
    %cst_11 = arith.constant 0.000000e+00 : f32
    %15 = vector.broadcast %cst_11 : f32 to vector<2x128xf32>
    %16 = arith.maximumf %14, %15 : vector<2x128xf32>
    %17 = arith.truncf %16 : vector<2x128xf32> to vector<2x128xbf16>
    %c0_12 = arith.constant 0 : index
    %c0_13 = arith.constant 0 : index
    %18 = vector.load %arg6[%c0_12, %c0_13] : memref<128x128xbf16, #tpu.memory_space<vmem>>, vector<128x128xbf16>
    %cst_14 = arith.constant dense<0.000000e+00> : vector<2x128xf32>
    %19 = tpu.matmul %17, %18, %cst_14 {dimension_numbers = #tpu.dot_dimension_numbers<[1], [0], [0], [1], [0, 0, 1, 1], [], []>} : vector<2x128xbf16>, vector<128x128xbf16>, vector<2x128xf32> -> vector<2x128xf32>
    %c0_15 = arith.constant 0 : index
    %c0_16 = arith.constant 0 : index
    %20 = vector.load %arg7[%c0_15, %c0_16] : memref<1x128xf32, #tpu.memory_space<vmem>>, vector<1x128xf32>
    %21 = vector.broadcast %20 : vector<1x128xf32> to vector<2x128xf32>
    %22 = arith.addf %19, %21 : vector<2x128xf32>
    %cst_17 = arith.constant dense<0xFF800000> : vector<2xf32>
    %23 = vector.multi_reduction <maximumf>, %22, %cst_17 [1] : vector<2x128xf32> to vector<2xf32>
    %24 = vector.shape_cast %23 : vector<2xf32> to vector<2x1xf32>
    %25 = vector.broadcast %24 : vector<2x1xf32> to vector<2x128xf32>
    %26 = arith.subf %22, %25 : vector<2x128xf32>
    %27 = math.exp %26 : vector<2x128xf32>
    %cst_18 = arith.constant dense<0.000000e+00> : vector<2xf32>
    %28 = vector.multi_reduction <add>, %27, %cst_18 [1] : vector<2x128xf32> to vector<2xf32>
    %29 = vector.shape_cast %28 : vector<2xf32> to vector<2x1xf32>
    %30 = math.log %29 : vector<2x1xf32>
    %31 = vector.broadcast %30 : vector<2x1xf32> to vector<2x128xf32>
    %32 = arith.subf %26, %31 : vector<2x128xf32>
    %c0_19 = arith.constant 0 : index
    %c0_20 = arith.constant 0 : index
    %33 = vector.load %arg8[%c0_19, %c0_20] : memref<2x128xf32, #tpu.memory_space<vmem>>, vector<2x128xf32>
    tpu.vector_store %arg8[%c0_19, %c0_20], %32 {strides = array<i32>} : memref<2x128xf32, #tpu.memory_space<vmem>>, vector<2x128xf32>,
    return
  }
  func.func @transform_0(%arg0: i32) -> (i32, i32) {
    %c0_i32 = arith.constant 0 : i32
    %c0_i32_0 = arith.constant 0 : i32
    return %arg0, %c0_i32 : i32, i32
  }
  func.func @transform_1(%arg0: i32) -> (i32, i32) {
    %c0_i32 = arith.constant 0 : i32
    %c0_i32_0 = arith.constant 0 : i32
    %c0_i32_1 = arith.constant 0 : i32
    return %c0_i32, %c0_i32_0 : i32, i32
  }
  func.func @transform_2(%arg0: i32) -> (i32, i32) {
    %c0_i32 = arith.constant 0 : i32
    %c0_i32_0 = arith.constant 0 : i32
    %c0_i32_1 = arith.constant 0 : i32
    return %c0_i32, %c0_i32_0 : i32, i32
  }
  func.func @transform_3(%arg0: i32) -> (i32, i32) {
    %c0_i32 = arith.constant 0 : i32
    %c0_i32_0 = arith.constant 0 : i32
    %c0_i32_1 = arith.constant 0 : i32
    return %c0_i32, %c0_i32_0 : i32, i32
  }
  func.func @transform_4(%arg0: i32) -> (i32, i32) {
    %c0_i32 = arith.constant 0 : i32
    %c0_i32_0 = arith.constant 0 : i32
    %c0_i32_1 = arith.constant 0 : i32
    return %c0_i32, %c0_i32_0 : i32, i32
  }
  func.func @transform_5(%arg0: i32) -> (i32, i32) {
    %c0_i32 = arith.constant 0 : i32
    %c0_i32_0 = arith.constant 0 : i32
    %c0_i32_1 = arith.constant 0 : i32
    return %c0_i32, %c0_i32_0 : i32, i32
  }
  func.func @transform_6(%arg0: i32) -> (i32, i32) {
    %c0_i32 = arith.constant 0 : i32
    %c0_i32_0 = arith.constant 0 : i32
    %c0_i32_1 = arith.constant 0 : i32
    return %c0_i32, %c0_i32_0 : i32, i32
  }
  func.func @transform_7(%arg0: i32) -> (i32, i32) {
    %c0_i32 = arith.constant 0 : i32
    %c0_i32_0 = arith.constant 0 : i32
    return %arg0, %c0_i32 : i32, i32
  }
}

</mosaic_0001>

<llo_original>
// kernel: fcnet_forward.1
$region0: #{fcnet_forward.1}
  #allocation0 [shape = 'u32[]', space=smem, size = 0x4, offset = 0x4, fixed_abs, tag = 'smem constant byte address 0x4 - core index']
  #allocation1 [shape = 'u32[144,128]{1,0:T(1,128)}', space=vmem, size = 0x12000, scoped, tag = 'internal scratch']
  %s0 = inlined_call_operand.vmem [shape: f32[2,400], index: 0, kind: input, shape index: {}]
  %s1 = inlined_call_operand.hbm [shape: bf16[400,128], index: 1, kind: input, shape index: {}]
  %s2 = inlined_call_operand.vmem [shape: f32[1,128], index: 2, kind: input, shape index: {}]
  %s3 = inlined_call_operand.vmem [shape: bf16[128,128], index: 3, kind: input, shape index: {}]
  %s4 = inlined_call_operand.vmem [shape: f32[1,128], index: 4, kind: input, shape index: {}]
  %s5 = inlined_call_operand.vmem [shape: bf16[128,128], index: 5, kind: input, shape index: {}]
  %s6 = inlined_call_operand.vmem [shape: f32[1,128], index: 6, kind: input, shape index: {}]
  %s7 = inlined_call_operand.hbm [shape: f32[2,128], index: 7, kind: output, shape index: {}]
  %s8 = sld [smem:[#allocation0]]
  $region42: #{fcnet_forward.1} parent=0
    _
  %s10 = ssub.s32 1, %s8
  %s11 = scalar_select 0, %s10, %s8
  $region1: #{fcnet_forward.1} parent=0
    #allocation2 [shape = 'u8[102400]{0}', space=vmem, size = 0x19000, scoped, tag = 'input window, operand 1, single buffered']
    #allocation3 [shape = 's32[1]{0}', space=sflag, size = 0x4, scoped, tag = 'scoped memory for fcnet_forward.1']
    #allocation4 [shape = 's32[1]{0}', space=sflag, size = 0x4, scoped, tag = 'scoped memory for fcnet_forward.1']
    #allocation5 [shape = 'u8[1024]{0}', space=vmem, size = 0x400, scoped, tag = 'output window, operand 0, single buffered']
    %12 = vsyncpa [#allocation3], 0
    %13 = vsyncpa [#allocation4], 0
    // Predicated region
    $region2: #{fcnet_forward.1} parent=1 // pred_check
      _
    $region3: #{fcnet_forward.1} parent=1 // pred_check_branch
      %15 = sbr.rel (0) target = $region5
    $region4: #{fcnet_forward.1} parent=1 // pred_region
      _
    $region5: #{fcnet_forward.1} parent=1 // pred_fallthru
      _
    // Predicated region
    $region6: #{fcnet_forward.1} parent=1 // pred_check
      _
    $region7: #{fcnet_forward.1} parent=1 // pred_check_branch
      %17 = sbr.rel (0) target = $region9
    $region8: #{fcnet_forward.1} parent=1 // pred_region
      %s19 = ssub.s32 3200, 3200
      %20 = vsyncadd [#allocation3], %s19
      %s21 = sshll.u32 [#allocation2], 4
      %s22 = int_to_ptr.vmem [resolvable:$true] %s21
      %27 = dma.hbm_to_vmem [thread:$0]  %s1, 3200, %s22, [#allocation3], 64, 64, 4
    $region9: #{fcnet_forward.1} parent=1 // pred_fallthru
      _
    // Predicated region
    $region10: #{fcnet_forward.1} parent=1 // pred_check
      _
    $region11: #{fcnet_forward.1} parent=1 // pred_check_branch
      %29 = sbr.rel (0) target = $region13
    $region12: #{fcnet_forward.1} parent=1 // pred_region
      _
    $region13: #{fcnet_forward.1} parent=1 // pred_fallthru
      _
    // Predicated region
    $region14: #{fcnet_forward.1} parent=1 // pred_check
      _
    $region15: #{fcnet_forward.1} parent=1 // pred_check_branch
      %31 = sbr.rel (0) target = $region17
    $region16: #{fcnet_forward.1} parent=1 // pred_region
      _
    $region17: #{fcnet_forward.1} parent=1 // pred_fallthru
      _
    // Predicated region
    $region18: #{fcnet_forward.1} parent=1 // pred_check
      _
    $region19: #{fcnet_forward.1} parent=1 // pred_check_branch
      %33 = sbr.rel (0) target = $region21
    $region20: #{fcnet_forward.1} parent=1 // pred_region
      _
    $region21: #{fcnet_forward.1} parent=1 // pred_fallthru
      _
    // Predicated region
    $region22: #{fcnet_forward.1} parent=1 // pred_check
      _
    $region23: #{fcnet_forward.1} parent=1 // pred_check_branch
      %35 = sbr.rel (0) target = $region25
    $region24: #{fcnet_forward.1} parent=1 // pred_region
      _
    $region25: #{fcnet_forward.1} parent=1 // pred_fallthru
      _
    // Predicated region
    $region26: #{fcnet_forward.1} parent=1 // pred_check
      _
    $region27: #{fcnet_forward.1} parent=1 // pred_check_branch
      %37 = sbr.rel (0) target = $region29
    $region28: #{fcnet_forward.1} parent=1 // pred_region
      _
    $region29: #{fcnet_forward.1} parent=1 // pred_fallthru
      _
    // Predicated region
    $region30: #{fcnet_forward.1} parent=1 // pred_check
      _
    $region31: #{fcnet_forward.1} parent=1 // pred_check_branch
      %39 = sbr.rel (0) target = $region33
    $region32: #{fcnet_forward.1} parent=1 // pred_region
      %40 = dma.done [#allocation3], 3200
    $region33: #{fcnet_forward.1} parent=1 // pred_fallthru
      _
    %v42 = vld [vmem:[%s0] sm:$0xff]
    %v44 = vcombine.high %v42, %v42
    %v46 = vunpack.c.l.s4 1983009808
    %v47 = vunpack.c.0.s8 %v46
    %v48 = vlaneseq
    %v49 = vshrl.u32 %v48, 7
    %v50 = vsub.s32 %v47, %v49
    %v51 = vrot.slane %v42, %v50
    %v53 = vunpack.c.l.s4 1983009808
    %v54 = vunpack.c.0.s8 %v53
    %v55 = vlaneseq
    %v56 = vshrl.u32 %v55, 7
    %v57 = vsub.s32 %v54, %v56
    %v58 = vrot.slane %v44, %v57
    %v59 = vcombine.high %v51, %v51
    %v60 = vcombine.high %v58, %v58
    %v65 = vpack.c.bf16 %v51, %v51
    %v66 = vpack.c.bf16 %v59, %v59
    %v67 = vpack.c.bf16 %v58, %v58
    %v68 = vpack.c.bf16 %v60, %v60
    %v69 = vld [vmem:[#allocation2] sm:$0xf]
    %v70 = vld [vmem:[#allocation2 + $0x4] sm:$0xf]
    %v71 = vld [vmem:[#allocation2 + $0x8] sm:$0xf]
    %v72 = vld [vmem:[#allocation2 + $0xc] sm:$0xf]
    %v73 = vld [vmem:[#allocation2 + $0x10] sm:$0xf]
    %v74 = vld [vmem:[#allocation2 + $0x14] sm:$0xf]
    %v75 = vld [vmem:[#allocation2 + $0x18] sm:$0xf]
    %v76 = vld [vmem:[#allocation2 + $0x1c] sm:$0xf]
    %v77 = vld [vmem:[#allocation2 + $0x20] sm:$0xf]
    %v78 = vld [vmem:[#allocation2 + $0x24] sm:$0xf]
    %v79 = vld [vmem:[#allocation2 + $0x28] sm:$0xf]
    %v80 = vld [vmem:[#allocation2 + $0x2c] sm:$0xf]
    %v81 = vld [vmem:[#allocation2 + $0x30] sm:$0xf]
    %v82 = vld [vmem:[#allocation2 + $0x34] sm:$0xf]
    %v83 = vld [vmem:[#allocation2 + $0x38] sm:$0xf]
    %v84 = vld [vmem:[#allocation2 + $0x3c] sm:$0xf]
    %v85 = vld [vmem:[#allocation2 + $0x40] sm:$0xf]
    %v86 = vld [vmem:[#allocation2 + $0x44] sm:$0xf]
    %v87 = vld [vmem:[#allocation2 + $0x48] sm:$0xf]
    %v88 = vld [vmem:[#allocation2 + $0x4c] sm:$0xf]
    %v89 = vld [vmem:[#allocation2 + $0x50] sm:$0xf]
    %v90 = vld [vmem:[#allocation2 + $0x54] sm:$0xf]
    %v91 = vld [vmem:[#allocation2 + $0x58] sm:$0xf]
    %v92 = vld [vmem:[#allocation2 + $0x5c] sm:$0xf]
    %v93 = vld [vmem:[#allocation2 + $0x60] sm:$0xf]
    %v94 = vld [vmem:[#allocation2 + $0x64] sm:$0xf]
    %v95 = vld [vmem:[#allocation2 + $0x68] sm:$0xf]
    %v96 = vld [vmem:[#allocation2 + $0x6c] sm:$0xf]
    %v97 = vld [vmem:[#allocation2 + $0x70] sm:$0xf]
    %v98 = vld [vmem:[#allocation2 + $0x74] sm:$0xf]
    %v99 = vld [vmem:[#allocation2 + $0x78] sm:$0xf]
    %v100 = vld [vmem:[#allocation2 + $0x7c] sm:$0xf]
    %v101 = vld [vmem:[#allocation2 + $0x80] sm:$0xf]
    %v102 = vld [vmem:[#allocation2 + $0x84] sm:$0xf]
    %v103 = vld [vmem:[#allocation2 + $0x88] sm:$0xf]
    %v104 = vld [vmem:[#allocation2 + $0x8c] sm:$0xf]
    %v105 = vld [vmem:[#allocation2 + $0x90] sm:$0xf]
    %v106 = vld [vmem:[#allocation2 + $0x94] sm:$0xf]
    %v107 = vld [vmem:[#allocation2 + $0x98] sm:$0xf]
    %v108 = vld [vmem:[#allocation2 + $0x9c] sm:$0xf]
    %v109 = vld [vmem:[#allocation2 + $0xa0] sm:$0xf]
    %v110 = vld [vmem:[#allocation2 + $0xa4] sm:$0xf]
    %v111 = vld [vmem:[#allocation2 + $0xa8] sm:$0xf]
    %v112 = vld [vmem:[#allocation2 + $0xac] sm:$0xf]
    %v113 = vld [vmem:[#allocation2 + $0xb0] sm:$0xf]
    %v114 = vld [vmem:[#allocation2 + $0xb4] sm:$0xf]
    %v115 = vld [vmem:[#allocation2 + $0xb8] sm:$0xf]
    %v116 = vld [vmem:[#allocation2 + $0xbc] sm:$0xf]
    %v117 = vld [vmem:[#allocation2 + $0xc0] sm:$0xf]
    %v118 = vld [vmem:[#allocation2 + $0xc4] sm:$0xf]
    %v119 = vld [vmem:[%s2] sm:$0x1]
    %v121 = vlaneseq
    %v122 = vshrl.u32 %v121, 7
    %v123 = vsub.s32 0, %v122
    %v124 = vrot.slane %v119, %v123
    %v176 = vunpack.c.l.b16 %v69
    %v177 = vunpack.c.l.b16 %v70
    %v178 = vunpack.c.l.b16 %v71
    %v179 = vunpack.c.l.b16 %v72
    %v180 = vunpack.c.l.b16 %v73
    %v181 = vunpack.c.l.b16 %v74
    %v182 = vunpack.c.l.b16 %v75
    %v183 = vunpack.c.l.b16 %v76
    %v184 = vunpack.c.l.b16 %v77
    %v185 = vunpack.c.l.b16 %v78
    %v186 = vunpack.c.l.b16 %v79
    %v187 = vunpack.c.l.b16 %v80
    %v188 = vunpack.c.l.b16 %v81
    %v189 = vunpack.c.l.b16 %v82
    %v190 = vunpack.c.l.b16 %v83
    %v191 = vunpack.c.l.b16 %v84
    %v192 = vunpack.c.l.b16 %v85
    %v193 = vunpack.c.l.b16 %v86
    %v194 = vunpack.c.l.b16 %v87
    %v195 = vunpack.c.l.b16 %v88
    %v196 = vunpack.c.l.b16 %v89
    %v197 = vunpack.c.l.b16 %v90
    %v198 = vunpack.c.l.b16 %v91
    %v199 = vunpack.c.l.b16 %v92
    %v200 = vunpack.c.l.b16 %v93
    %v201 = vunpack.c.l.b16 %v94
    %v202 = vunpack.c.l.b16 %v95
    %v203 = vunpack.c.l.b16 %v96
    %v204 = vunpack.c.l.b16 %v97
    %v205 = vunpack.c.l.b16 %v98
    %v206 = vunpack.c.l.b16 %v99
    %v207 = vunpack.c.l.b16 %v100
    %v208 = vunpack.c.l.b16 %v101
    %v209 = vunpack.c.l.b16 %v102
    %v210 = vunpack.c.l.b16 %v103
    %v211 = vunpack.c.l.b16 %v104
    %v212 = vunpack.c.l.b16 %v105
    %v213 = vunpack.c.l.b16 %v106
    %v214 = vunpack.c.l.b16 %v107
    %v215 = vunpack.c.l.b16 %v108
    %v216 = vunpack.c.l.b16 %v109
    %v217 = vunpack.c.l.b16 %v110
    %v218 = vunpack.c.l.b16 %v111
    %v219 = vunpack.c.l.b16 %v112
    %v220 = vunpack.c.l.b16 %v113
    %v221 = vunpack.c.l.b16 %v114
    %v222 = vunpack.c.l.b16 %v115
    %v223 = vunpack.c.l.b16 %v116
    %v224 = vunpack.c.l.b16 %v117
    %v225 = vunpack.c.l.b16 %v118
    %v226 = vpack.c.b16 %v177, %v176
    %v227 = vpack.c.b16 %v179, %v178
    %v228 = vpack.c.b16 %v181, %v180
    %v229 = vpack.c.b16 %v183, %v182
    %v230 = vpack.c.b16 %v185, %v184
    %v231 = vpack.c.b16 %v187, %v186
    %v232 = vpack.c.b16 %v189, %v188
    %v233 = vpack.c.b16 %v191, %v190
    %v234 = vpack.c.b16 %v193, %v192
    %v235 = vpack.c.b16 %v195, %v194
    %v236 = vpack.c.b16 %v197, %v196
    %v237 = vpack.c.b16 %v199, %v198
    %v238 = vpack.c.b16 %v201, %v200
    %v239 = vpack.c.b16 %v203, %v202
    %v240 = vpack.c.b16 %v205, %v204
    %v241 = vpack.c.b16 %v207, %v206
    %v242 = vpack.c.b16 %v209, %v208
    %v243 = vpack.c.b16 %v211, %v210
    %v244 = vpack.c.b16 %v213, %v212
    %v245 = vpack.c.b16 %v215, %v214
    %v246 = vpack.c.b16 %v217, %v216
    %v247 = vpack.c.b16 %v219, %v218
    %v248 = vpack.c.b16 %v221, %v220
    %v249 = vpack.c.b16 %v223, %v222
    %v250 = vpack.c.b16 %v225, %v224
    %vm276 = vcmask 130048
    %v278 = vsel %vm276, %v68, 0
    %280 = vmatprep.subr.bf16.mxu0 0
    %281 = vmatpush1.bf16.msra.mxu0 %v226
    %282 = vmatprep.subr.bf16.mxu0 0
    %283 = vmatpush1.bf16.msra.mxu0 %v227
    %284 = vmatprep.subr.bf16.mxu0 0
    %285 = vmatpush1.bf16.msra.mxu0 %v228
    %286 = vmatprep.subr.bf16.mxu0 0
    %287 = vmatpush1.bf16.msra.mxu0 %v229
    %288 = vmatprep.subr.bf16.mxu0 0
    %289 = vmatpush1.bf16.msra.mxu0 %v230
    %290 = vmatprep.subr.bf16.mxu0 0
    %291 = vmatpush1.bf16.msra.mxu0 %v231
    %292 = vmatprep.subr.bf16.mxu0 0
    %293 = vmatpush1.bf16.msra.mxu0 %v232
    %294 = vmatprep.subr.bf16.mxu0 0
    %295 = vmatpush1.bf16.msra.mxu0 %v233
    %296 = vmatprep.subr.bf16.mxu0 0
    %297 = vmatpush1.bf16.msra.mxu0 %v234
    %298 = vmatprep.subr.bf16.mxu0 0
    %299 = vmatpush1.bf16.msra.mxu0 %v235
    %300 = vmatprep.subr.bf16.mxu0 0
    %301 = vmatpush1.bf16.msra.mxu0 %v236
    %302 = vmatprep.subr.bf16.mxu0 0
    %303 = vmatpush1.bf16.msra.mxu0 %v237
    %304 = vmatprep.subr.bf16.mxu0 0
    %305 = vmatpush1.bf16.msra.mxu0 %v238
    %306 = vmatprep.subr.bf16.mxu0 0
    %307 = vmatpush1.bf16.msra.mxu0 %v239
    %308 = vmatprep.subr.bf16.mxu0 0
    %309 = vmatpush1.bf16.msra.mxu0 %v240
    %310 = vmatprep.subr.bf16.mxu0 0
    %311 = vmatpush1.bf16.msra.mxu0 %v241
    %312 = vmatprep.mubr.bf16.mxu0 %v66
    %313 = vmatmul.mubr.bf16.gmra.mrb[0].mxu0 %v65
    %v314 = vpop.f32.mrb[0].mxu0
    %v315 = vadd.f32 %v124, %v314
    %v316 = vpop.f32.mrb[0].mxu0
    %v317 = vpop.f32.mrb[0].mxu0
    %v318 = vpop.f32.mrb[0].mxu0
    %319 = vdwg.mxu0
    %320 = vmatprep.subr.bf16.mxu0 0
    %321 = vmatpush1.bf16.msra.mxu0 %v242
    %322 = vmatprep.subr.bf16.mxu0 0
    %323 = vmatpush1.bf16.msra.mxu0 %v243
    %324 = vmatprep.subr.bf16.mxu0 0
    %325 = vmatpush1.bf16.msra.mxu0 %v244
    %326 = vmatprep.subr.bf16.mxu0 0
    %327 = vmatpush1.bf16.msra.mxu0 %v245
    %328 = vmatprep.subr.bf16.mxu0 0
    %329 = vmatpush1.bf16.msra.mxu0 %v246
    %330 = vmatprep.subr.bf16.mxu0 0
    %331 = vmatpush1.bf16.msra.mxu0 %v247
    %332 = vmatprep.subr.bf16.mxu0 0
    %333 = vmatpush1.bf16.msra.mxu0 %v248
    %334 = vmatprep.subr.bf16.mxu0 0
    %335 = vmatpush1.bf16.msra.mxu0 %v249
    %336 = vmatprep.subr.bf16.mxu0 0
    %337 = vmatpush1.bf16.msra.mxu0 %v250
    %338 = vmatprep.subr.bf16.mxu0 0
    %339 = vmatpush1.bf16.msra.mxu0 0
    %340 = vmatprep.subr.bf16.mxu0 0
    %341 = vmatpush1.bf16.msra.mxu0 0
    %342 = vmatprep.subr.bf16.mxu0 0
    %343 = vmatpush1.bf16.msra.mxu0 0
    %344 = vmatprep.subr.bf16.mxu0 0
    %345 = vmatpush1.bf16.msra.mxu0 0
    %346 = vmatprep.subr.bf16.mxu0 0
    %347 = vmatpush1.bf16.msra.mxu0 0
    %348 = vmatprep.subr.bf16.mxu0 0
    %349 = vmatpush1.bf16.msra.mxu0 0
    %350 = vmatprep.subr.bf16.mxu0 0
    %351 = vmatpush1.bf16.msra.mxu0 0
    %352 = vmatprep.mubr.bf16.mxu0 %v278
    %353 = vmatmul.mubr.bf16.gmra.mrb[0].mxu0 %v67
    %v354 = vpop.f32.mrb[0].mxu0
    %v355 = vadd.f32 %v315, %v354
    %v356 = vpop.f32.mrb[0].mxu0
    %v357 = vpop.f32.mrb[0].mxu0
    %v358 = vpop.f32.mrb[0].mxu0
    %359 = vdwg.mxu0
    %v360 = vmax.f32 %v355, 0.0
    %v361 = vpack.c.bf16 %v360, %v360
    %v362 = vld [vmem:[%s3] sm:$0xf]
    %v363 = vld [vmem:[%s3 + $0x4] sm:$0xf]
    %v364 = vld [vmem:[%s3 + $0x8] sm:$0xf]
    %v365 = vld [vmem:[%s3 + $0xc] sm:$0xf]
    %v366 = vld [vmem:[%s3 + $0x10] sm:$0xf]
    %v367 = vld [vmem:[%s3 + $0x14] sm:$0xf]
    %v368 = vld [vmem:[%s3 + $0x18] sm:$0xf]
    %v369 = vld [vmem:[%s3 + $0x1c] sm:$0xf]
    %v370 = vld [vmem:[%s3 + $0x20] sm:$0xf]
    %v371 = vld [vmem:[%s3 + $0x24] sm:$0xf]
    %v372 = vld [vmem:[%s3 + $0x28] sm:$0xf]
    %v373 = vld [vmem:[%s3 + $0x2c] sm:$0xf]
    %v374 = vld [vmem:[%s3 + $0x30] sm:$0xf]
    %v375 = vld [vmem:[%s3 + $0x34] sm:$0xf]
    %v376 = vld [vmem:[%s3 + $0x38] sm:$0xf]
    %v377 = vld [vmem:[%s3 + $0x3c] sm:$0xf]
    %v378 = vld [vmem:[%s4] sm:$0x1]
    %v380 = vlaneseq
    %v381 = vshrl.u32 %v380, 7
    %v382 = vsub.s32 0, %v381
    %v383 = vrot.slane %v378, %v382
    %v401 = vunpack.c.l.b16 %v362
    %v402 = vunpack.c.l.b16 %v363
    %v403 = vunpack.c.l.b16 %v364
    %v404 = vunpack.c.l.b16 %v365
    %v405 = vunpack.c.l.b16 %v366
    %v406 = vunpack.c.l.b16 %v367
    %v407 = vunpack.c.l.b16 %v368
    %v408 = vunpack.c.l.b16 %v369
    %v409 = vunpack.c.l.b16 %v370
    %v410 = vunpack.c.l.b16 %v371
    %v411 = vunpack.c.l.b16 %v372
    %v412 = vunpack.c.l.b16 %v373
    %v413 = vunpack.c.l.b16 %v374
    %v414 = vunpack.c.l.b16 %v375
    %v415 = vunpack.c.l.b16 %v376
    %v416 = vunpack.c.l.b16 %v377
    %v417 = vpack.c.b16 %v402, %v401
    %v418 = vpack.c.b16 %v404, %v403
    %v419 = vpack.c.b16 %v406, %v405
    %v420 = vpack.c.b16 %v408, %v407
    %v421 = vpack.c.b16 %v410, %v409
    %v422 = vpack.c.b16 %v412, %v411
    %v423 = vpack.c.b16 %v414, %v413
    %v424 = vpack.c.b16 %v416, %v415
    %433 = vmatprep.subr.bf16.mxu0 0
    %434 = vmatpush1.bf16.msra.mxu0 %v417
    %435 = vmatprep.subr.bf16.mxu0 0
    %436 = vmatpush1.bf16.msra.mxu0 %v418
    %437 = vmatprep.subr.bf16.mxu0 0
    %438 = vmatpush1.bf16.msra.mxu0 %v419
    %439 = vmatprep.subr.bf16.mxu0 0
    %440 = vmatpush1.bf16.msra.mxu0 %v420
    %441 = vmatprep.subr.bf16.mxu0 0
    %442 = vmatpush1.bf16.msra.mxu0 %v421
    %443 = vmatprep.subr.bf16.mxu0 0
    %444 = vmatpush1.bf16.msra.mxu0 %v422
    %445 = vmatprep.subr.bf16.mxu0 0
    %446 = vmatpush1.bf16.msra.mxu0 %v423
    %447 = vmatprep.subr.bf16.mxu0 0
    %448 = vmatpush1.bf16.msra.mxu0 %v424
    %449 = vmatprep.subr.bf16.mxu0 0
    %450 = vmatpush1.bf16.msra.mxu0 0
    %451 = vmatprep.subr.bf16.mxu0 0
    %452 = vmatpush1.bf16.msra.mxu0 0
    %453 = vmatprep.subr.bf16.mxu0 0
    %454 = vmatpush1.bf16.msra.mxu0 0
    %455 = vmatprep.subr.bf16.mxu0 0
    %456 = vmatpush1.bf16.msra.mxu0 0
    %457 = vmatprep.subr.bf16.mxu0 0
    %458 = vmatpush1.bf16.msra.mxu0 0
    %459 = vmatprep.subr.bf16.mxu0 0
    %460 = vmatpush1.bf16.msra.mxu0 0
    %461 = vmatprep.subr.bf16.mxu0 0
    %462 = vmatpush1.bf16.msra.mxu0 0
    %463 = vmatprep.subr.bf16.mxu0 0
    %464 = vmatpush1.bf16.msra.mxu0 0
    %465 = vmatprep.mubr.bf16.mxu0 0
    %466 = vmatmul.mubr.bf16.gmra.mrb[0].mxu0 %v361
    %v467 = vpop.f32.mrb[0].mxu0
    %v468 = vadd.f32 %v383, %v467
    %v469 = vpop.f32.mrb[0].mxu0
    %v470 = vpop.f32.mrb[0].mxu0
    %v471 = vpop.f32.mrb[0].mxu0
    %472 = vdwg.mxu0
    %v473 = vmax.f32 %v468, 0.0
    %v474 = vpack.c.bf16 %v473, %v473
    %v475 = vld [vmem:[%s5] sm:$0xf]
    %v476 = vld [vmem:[%s5 + $0x4] sm:$0xf]
    %v477 = vld [vmem:[%s5 + $0x8] sm:$0xf]
    %v478 = vld [vmem:[%s5 + $0xc] sm:$0xf]
    %v479 = vld [vmem:[%s5 + $0x10] sm:$0xf]
    %v480 = vld [vmem:[%s5 + $0x14] sm:$0xf]
    %v481 = vld [vmem:[%s5 + $0x18] sm:$0xf]
    %v482 = vld [vmem:[%s5 + $0x1c] sm:$0xf]
    %v483 = vld [vmem:[%s5 + $0x20] sm:$0xf]
    %v484 = vld [vmem:[%s5 + $0x24] sm:$0xf]
    %v485 = vld [vmem:[%s5 + $0x28] sm:$0xf]
    %v486 = vld [vmem:[%s5 + $0x2c] sm:$0xf]
    %v487 = vld [vmem:[%s5 + $0x30] sm:$0xf]
    %v488 = vld [vmem:[%s5 + $0x34] sm:$0xf]
    %v489 = vld [vmem:[%s5 + $0x38] sm:$0xf]
    %v490 = vld [vmem:[%s5 + $0x3c] sm:$0xf]
    %v491 = vld [vmem:[%s6] sm:$0x1]
    %v493 = vlaneseq
    %v494 = vshrl.u32 %v493, 7
    %v495 = vsub.s32 0, %v494
    %v496 = vrot.slane %v491, %v495
    %v514 = vunpack.c.l.b16 %v475
    %v515 = vunpack.c.l.b16 %v476
    %v516 = vunpack.c.l.b16 %v477
    %v517 = vunpack.c.l.b16 %v478
    %v518 = vunpack.c.l.b16 %v479
    %v519 = vunpack.c.l.b16 %v480
    %v520 = vunpack.c.l.b16 %v481
    %v521 = vunpack.c.l.b16 %v482
    %v522 = vunpack.c.l.b16 %v483
    %v523 = vunpack.c.l.b16 %v484
    %v524 = vunpack.c.l.b16 %v485
    %v525 = vunpack.c.l.b16 %v486
    %v526 = vunpack.c.l.b16 %v487
    %v527 = vunpack.c.l.b16 %v488
    %v528 = vunpack.c.l.b16 %v489
    %v529 = vunpack.c.l.b16 %v490
    %v530 = vpack.c.b16 %v515, %v514
    %v531 = vpack.c.b16 %v517, %v516
    %v532 = vpack.c.b16 %v519, %v518
    %v533 = vpack.c.b16 %v521, %v520
    %v534 = vpack.c.b16 %v523, %v522
    %v535 = vpack.c.b16 %v525, %v524
    %v536 = vpack.c.b16 %v527, %v526
    %v537 = vpack.c.b16 %v529, %v528
    %546 = vmatprep.subr.bf16.mxu0 0
    %547 = vmatpush1.bf16.msra.mxu0 %v530
    %548 = vmatprep.subr.bf16.mxu0 0
    %549 = vmatpush1.bf16.msra.mxu0 %v531
    %550 = vmatprep.subr.bf16.mxu0 0
    %551 = vmatpush1.bf16.msra.mxu0 %v532
    %552 = vmatprep.subr.bf16.mxu0 0
    %553 = vmatpush1.bf16.msra.mxu0 %v533
    %554 = vmatprep.subr.bf16.mxu0 0
    %555 = vmatpush1.bf16.msra.mxu0 %v534
    %556 = vmatprep.subr.bf16.mxu0 0
    %557 = vmatpush1.bf16.msra.mxu0 %v535
    %558 = vmatprep.subr.bf16.mxu0 0
    %559 = vmatpush1.bf16.msra.mxu0 %v536
    %560 = vmatprep.subr.bf16.mxu0 0
    %561 = vmatpush1.bf16.msra.mxu0 %v537
    %562 = vmatprep.subr.bf16.mxu0 0
    %563 = vmatpush1.bf16.msra.mxu0 0
    %564 = vmatprep.subr.bf16.mxu0 0
    %565 = vmatpush1.bf16.msra.mxu0 0
    %566 = vmatprep.subr.bf16.mxu0 0
    %567 = vmatpush1.bf16.msra.mxu0 0
    %568 = vmatprep.subr.bf16.mxu0 0
    %569 = vmatpush1.bf16.msra.mxu0 0
    %570 = vmatprep.subr.bf16.mxu0 0
    %571 = vmatpush1.bf16.msra.mxu0 0
    %572 = vmatprep.subr.bf16.mxu0 0
    %573 = vmatpush1.bf16.msra.mxu0 0
    %574 = vmatprep.subr.bf16.mxu0 0
    %575 = vmatpush1.bf16.msra.mxu0 0
    %576 = vmatprep.subr.bf16.mxu0 0
    %577 = vmatpush1.bf16.msra.mxu0 0
    %578 = vmatprep.mubr.bf16.mxu0 0
    %579 = vmatmul.mubr.bf16.gmra.mrb[0].mxu0 %v474
    %v580 = vpop.f32.mrb[0].mxu0
    %v581 = vadd.f32 %v496, %v580
    %v582 = vpop.f32.mrb[0].mxu0
    %v583 = vpop.f32.mrb[0].mxu0
    %v584 = vpop.f32.mrb[0].mxu0
    %585 = vdwg.mxu0
    %vm586 = vcmask 1041408
    %v587 = vsel %vm586, %v581, -inf
    %588 = vmax.xlane.f32.xlu0 %v587
    %v589 = vpop.xlane.xlu0 %588
    %v590 = vsub.f32 %v581, %v589
    %v591 = vmul.f32 %v590, 1.442695
    %v592 = vpow.pop %v591
    %v593 = vsel %vm586, %v592, 0.0
    %594 = vadd.xlane.f32.xlu0 %v593
    %v595 = vpop.xlane.xlu0 %594
    %v596 = vlog2.pop %v595
    %v597 = vmul.f32 %v596, 0.6931472
    %v598 = vsub.f32 %v590, %v597
    %599 = vst [vmem:[#allocation5] sm:$0x3] %v598
    // Predicated region
    $region34: #{fcnet_forward.1} parent=1 // pred_check
      _
    $region35: #{fcnet_forward.1} parent=1 // pred_check_branch
      %601 = sbr.rel (0) target = $region37
    $region36: #{fcnet_forward.1} parent=1 // pred_region
      %s603 = ssub.s32 32, 32
      %604 = vsyncadd [#allocation4], %s603
      %s606 = sshll.u32 [#allocation5], 4
      %s607 = int_to_ptr.vmem [resolvable:$true] %s606
      %609 = dma.vmem_to_hbm [thread:$0]  %s607, 32, %s7, [#allocation4]
    $region37: #{fcnet_forward.1} parent=1 // pred_fallthru
      _
    // Predicated region
    $region38: #{fcnet_forward.1} parent=1 // pred_check
      _
    $region39: #{fcnet_forward.1} parent=1 // pred_check_branch
      %611 = sbr.rel (0) target = $region41
    $region40: #{fcnet_forward.1} parent=1 // pred_region
      %612 = dma.done [#allocation4], 32
    $region41: #{fcnet_forward.1} parent=1 // pred_fallthru
      _
    %613 = vsyncpa [#allocation3], 1
    %614 = vsyncpa [#allocation4], 1

</llo_original>
